<compile_context>
chip_gen: v7x
topology: tpu7x:2x2x1
jax: 0.10.0
libtpu: 0.0.40
codegen_flags: <defaults>
</compile_context>

<pallas_src>
import functools
import math

import jax
import jax.numpy as jnp
from jax.experimental import pallas as pl
from jax.experimental.pallas import tpu as pltpu


# -------------------------- small synthetic GPT-2 config --------------------
class Cfg:
    n_embd = 64
    n_inner = None            # -> 4 * n_embd
    activation_function = "gelu_new"
    resid_pdrop = 0.1         # identity in eval mode


# ------------------------------- Pallas kernel -------------------------------
_GELU_C = 0.7978845608028654        # sqrt(2/pi)
_GELU_C3 = _GELU_C * 0.044715       # folded constant


def _gelu_new(x):
    # GPT-2 "gelu_new" (tanh approximation), f32 math, trimmed VALU op count:
    #   0.5*x*(1 + tanh(c*x + c*0.044715*x^3)) == hx + hx*tanh(x*(c + c3*x*x))
    t = jnp.tanh(x * (_GELU_C + _GELU_C3 * (x * x)))
    hx = 0.5 * x
    return hx + hx * t


def _mlp_kernel(x_ref, wfc_ref, bfc_ref, wproj_ref, bproj_ref, o_ref, acc_ref):
    """One (row-tile, inner-tile) grid step.

    acc_ref accumulates the c_proj matmul over the inner (reduction) axis.
    """
    k = pl.program_id(1)

    @pl.when(k == 0)
    def _init():
        acc_ref[...] = jnp.zeros_like(acc_ref)

    x = x_ref[...].astype(jnp.bfloat16)                     # MXU operand
    h = jnp.dot(x, wfc_ref[...], preferred_element_type=jnp.float32)
    h = _gelu_new(h + bfc_ref[...])                         # f32 elementwise
    acc_ref[...] += jnp.dot(h.astype(jnp.bfloat16), wproj_ref[...],
                            preferred_element_type=jnp.float32)

    @pl.when(k == pl.num_programs(1) - 1)
    def _finalize():
        # dropout(resid_pdrop) is identity in eval mode.
        # TODO(synk): training-mode dropout (pltpu.prng_seed/prng_random_bits
        # + 1/(1-p) scaling) not implemented.
        o_ref[...] = (acc_ref[...] + bproj_ref[...]).astype(o_ref.dtype)


# ------------------------------- tiling heuristics ----------------------------
def _vmem_limit_bytes():
    # v5e/v6e: 128 MiB physical VMEM -> 96 MiB scoped; v7x: 64 MiB -> 48 MiB.
    cap = 0
    try:
        cap = int(pltpu.get_tpu_info().vmem_capacity_bytes)
    except Exception:
        cap = 0
    if cap <= 0:
        cap = 64 * 1024 * 1024          # conservative (v7x) fallback
    return int(min(96 * 1024 * 1024, cap * 3 // 4))


def _pick_inner_tile(d, inner, block_rows, budget_bytes):
    """Largest halving divisor of `inner` (multiple of 128) that fits VMEM."""

    def need(t, n_buf):
        weights = 2 * d * t * 2 * n_buf            # W_fc & W_proj slices, bf16
        biases = (t + d) * 4 * n_buf
        io = block_rows * d * 4 * 4                # x (2 bufs) + out (2 bufs), f32
        acc = block_rows * d * 4                   # f32 accumulator scratch
        interm = block_rows * t * 6                # h f32 + bf16 copy
        return weights + biases + io + acc + interm

    if need(inner, 1) <= budget_bytes:             # fully resident, single k step
        return inner
    t = inner
    while need(t, 2) > budget_bytes and t % 2 == 0 and (t // 2) % 128 == 0:
        t //= 2
    return t


# ------------------------------- wrapper --------------------------------------
def gpt2_mlp(x, w_fc, b_fc, w_proj, b_proj, *, block_rows=512,
             single_buffer_weights=True):
    """Fused y = gelu_new(x @ w_fc + b_fc) @ w_proj + b_proj  (eval-mode dropout).

    x:      (..., D)      activations (f32 or bf16)
    w_fc:   (D, inner)    effective (Conv1D-orientation, already .T'd) c_fc weight
    b_fc:   (inner,)
    w_proj: (inner, D)
    b_proj: (D,)
    """
    orig_shape = x.shape
    d = orig_shape[-1]
    inner = w_fc.shape[1]
    n = math.prod(orig_shape[:-1])
    x2 = x.reshape(n, d)

    # Row tile: multiple of 8 (sublane), capped by problem size.
    block_rows = max(8, min(block_rows, pl.next_power_of_2(max(n, 1))))
    block_rows = ((block_rows + 7) // 8) * 8
    n_pad = pl.cdiv(n, block_rows) * block_rows
    if n_pad != n:
        x2 = jnp.pad(x2, ((0, n_pad - n), (0, 0)))

    vmem_limit = _vmem_limit_bytes()
    tile_inner = _pick_inner_tile(d, inner, block_rows, (vmem_limit * 3) // 4)
    num_k = inner // tile_inner
    weights_resident = num_k == 1

    # Cast MXU operands (weights) to bf16 once in the wrapper; biases stay f32.
    w_fc_bf = w_fc.astype(jnp.bfloat16)
    w_proj_bf = w_proj.astype(jnp.bfloat16)
    b_fc2 = b_fc.reshape(1, inner).astype(jnp.float32)
    b_proj2 = b_proj.reshape(1, d).astype(jnp.float32)

    # Blocks whose index_map is constant over the whole grid are fetched once;
    # single-buffer them so they don't occupy 2x VMEM.
    def spec(shape, index_map, constant):
        if single_buffer_weights and constant:
            return pl.BlockSpec(shape, index_map, pipeline_mode=pl.Buffered(1))
        return pl.BlockSpec(shape, index_map)

    grid = (n_pad // block_rows, num_k)

    out = pl.pallas_call(
        _mlp_kernel,
        out_shape=jax.ShapeDtypeStruct((n_pad, d), x.dtype),
        grid_spec=pltpu.PrefetchScalarGridSpec(
            num_scalar_prefetch=0,
            grid=grid,
            in_specs=[
                pl.BlockSpec((block_rows, d), lambda i, k: (i, 0)),             # x tile
                spec((d, tile_inner), lambda i, k: (0, k), weights_resident),   # W_fc
                spec((1, tile_inner), lambda i, k: (0, k), weights_resident),   # b_fc
                spec((tile_inner, d), lambda i, k: (k, 0), weights_resident),   # W_proj
                spec((1, d), lambda i, k: (0, 0), True),                        # b_proj
            ],
            out_specs=pl.BlockSpec((block_rows, d), lambda i, k: (i, 0)),
            scratch_shapes=[pltpu.VMEM((block_rows, d), jnp.float32)],
        ),
        compiler_params=pltpu.CompilerParams(
            dimension_semantics=("parallel", "arbitrary"),   # rows megacore-parallel
            vmem_limit_bytes=vmem_limit,
        ),
    )(x2, w_fc_bf, b_fc2, w_proj_bf, b_proj2)

    if n_pad != n:
        out = out[:n]
    return out.reshape(orig_shape)


# ------------------------------- pure-JAX reference ---------------------------
def mlp_reference(x, w_fc, b_fc, w_proj, b_proj):
    h = x @ w_fc + b_fc
    h = 0.5 * h * (1.0 + jnp.tanh(0.7978845608028654 * (h + 0.044715 * h ** 3)))
    return h @ w_proj + b_proj


# ------------------------------------ main ------------------------------------
if __name__ == "__main__":
    cfg = Cfg()
    d = cfg.n_embd
    inner = cfg.n_inner if cfg.n_inner is not None else 4 * d

    key = jax.random.PRNGKey(0)
    kx, k1, k2, k3, k4 = jax.random.split(key, 5)

    B, S = 2, 8
    x = jax.random.normal(kx, (B, S, d), jnp.float32)
    # Effective (Conv1D-orientation) weights, matching the module's .T load:
    w_fc = jax.random.normal(k1, (d, inner), jnp.float32) * 0.02
    b_fc = jax.random.normal(k2, (inner,), jnp.float32) * 0.02
    w_proj = jax.random.normal(k3, (inner, d), jnp.float32) * 0.02
    b_proj = jax.random.normal(k4, (d,), jnp.float32) * 0.02

    # NOTE: D=64 here is a toy size (lane-sparse stores); real GPT-2 widths
    # (768/1024/1280/1600) are multiples of 128 and hit the unmasked store
    # path.  block_rows=8 just exercises a >=2-step row grid (both v7x cores
    # get work); the default is 512 for realistic shapes.
    def run(single_buffer):
        fn = functools.partial(gpt2_mlp, block_rows=8,
                               single_buffer_weights=single_buffer)
        return jax.block_until_ready(jax.jit(fn)(x, w_fc, b_fc, w_proj, b_proj))

    try:
        y = run(True)
    except Exception:
        # TODO(synk): pl.Buffered(1) pipeline_mode unsupported on this jax
        # version; fall back to default double-buffered weight blocks.
        y = run(False)

    y_ref = mlp_reference(x, w_fc, b_fc, w_proj, b_proj)
    assert y.shape == (B, S, d)
    # bf16 MXU operands -> relaxed tolerance vs. the f32 reference.
    assert jnp.allclose(y, y_ref, rtol=5e-2, atol=1e-2), \
        float(jnp.max(jnp.abs(y - y_ref)))
    print("KERNEL_OK")
</pallas_src>

<mosaic_0001>
module attributes {stable_mosaic.version = 11 : i64} {
  func.func @_mlp_kernel(%arg0: i32, %arg1: i32, %arg2: memref<8x64xf32, #tpu.memory_space<vmem>>, %arg3: memref<64x256xbf16, #tpu.memory_space<vmem>>, %arg4: memref<1x256xf32, #tpu.memory_space<vmem>>, %arg5: memref<256x64xbf16, #tpu.memory_space<vmem>>, %arg6: memref<1x64xf32, #tpu.memory_space<vmem>>, %arg7: memref<8x64xf32, #tpu.memory_space<vmem>>, %arg8: memref<8x64xf32, #tpu.memory_space<vmem>>) attributes {dimension_semantics = [#tpu.dimension_semantics<parallel>, #tpu.dimension_semantics<arbitrary>], iteration_bounds = array<i64: 2, 1>, scalar_prefetch = 0 : i64, scratch_operands = 1 : i64, tpu.core_type = #tpu.core_type<tc>, window_params = [{transform_indices = @transform_0, window_bounds = array<i64: 8, 64>}, {pipeline_mode = #tpu.pipeline_mode<synchronous>, transform_indices = @transform_1, window_bounds = array<i64: 64, 256>}, {pipeline_mode = #tpu.pipeline_mode<synchronous>, transform_indices = @transform_2, window_bounds = array<i64: 1, 256>}, {pipeline_mode = #tpu.pipeline_mode<synchronous>, transform_indices = @transform_3, window_bounds = array<i64: 256, 64>}, {pipeline_mode = #tpu.pipeline_mode<synchronous>, transform_indices = @transform_4, window_bounds = array<i64: 1, 64>}, {transform_indices = @transform_5, window_bounds = array<i64: 8, 64>}]} {
    %c0_i32 = arith.constant 0 : i32
    %0 = arith.cmpi eq, %arg1, %c0_i32 : i32
    %1 = arith.extui %0 : i1 to i32
    %c0_i32_0 = arith.constant 0 : i32
    %2 = arith.cmpi ne, %1, %c0_i32_0 : i32
    scf.if %2 {
      %cst_18 = arith.constant 0.000000e+00 : f32
      %30 = vector.broadcast %cst_18 : f32 to vector<8x64xf32>
      %c0_19 = arith.constant 0 : index
      %c0_20 = arith.constant 0 : index
      %31 = vector.load %arg8[%c0_19, %c0_20] : memref<8x64xf32, #tpu.memory_space<vmem>>, vector<8x64xf32>
      tpu.vector_store %arg8[%c0_19, %c0_20], %30 {strides = array<i32>} : memref<8x64xf32, #tpu.memory_space<vmem>>, vector<8x64xf32>,
    } else {
    }
    %c0 = arith.constant 0 : index
    %c0_1 = arith.constant 0 : index
    %3 = vector.load %arg2[%c0, %c0_1] : memref<8x64xf32, #tpu.memory_space<vmem>>, vector<8x64xf32>
    %4 = arith.truncf %3 : vector<8x64xf32> to vector<8x64xbf16>
    %c0_2 = arith.constant 0 : index
    %c0_3 = arith.constant 0 : index
    %5 = vector.load %arg3[%c0_2, %c0_3] : memref<64x256xbf16, #tpu.memory_space<vmem>>, vector<64x256xbf16>
    %cst = arith.constant dense<0.000000e+00> : vector<8x256xf32>
    %6 = tpu.matmul %4, %5, %cst {dimension_numbers = #tpu.dot_dimension_numbers<[1], [0], [0], [1], [0, 0, 1, 1], [], []>} : vector<8x64xbf16>, vector<64x256xbf16>, vector<8x256xf32> -> vector<8x256xf32>
    %c0_4 = arith.constant 0 : index
    %c0_5 = arith.constant 0 : index
    %7 = vector.load %arg4[%c0_4, %c0_5] : memref<1x256xf32, #tpu.memory_space<vmem>>, vector<1x256xf32>
    %8 = vector.broadcast %7 : vector<1x256xf32> to vector<8x256xf32>
    %9 = arith.addf %6, %8 : vector<8x256xf32>
    %10 = arith.mulf %9, %9 : vector<8x256xf32>
    %cst_6 = arith.constant 0.0356774069 : f32
    %11 = vector.broadcast %cst_6 : f32 to vector<8x256xf32>
    %12 = arith.mulf %11, %10 : vector<8x256xf32>
    %cst_7 = arith.constant 0.797884583 : f32
    %13 = vector.broadcast %cst_7 : f32 to vector<8x256xf32>
    %14 = arith.addf %13, %12 : vector<8x256xf32>
    %15 = arith.mulf %9, %14 : vector<8x256xf32>
    %16 = math.tanh %15 : vector<8x256xf32>
    %cst_8 = arith.constant 5.000000e-01 : f32
    %17 = vector.broadcast %cst_8 : f32 to vector<8x256xf32>
    %18 = arith.mulf %17, %9 : vector<8x256xf32>
    %19 = arith.mulf %18, %16 : vector<8x256xf32>
    %20 = arith.addf %18, %19 : vector<8x256xf32>
    %c0_9 = arith.constant 0 : index
    %c0_10 = arith.constant 0 : index
    %21 = vector.load %arg8[%c0_9, %c0_10] : memref<8x64xf32, #tpu.memory_space<vmem>>, vector<8x64xf32>
    %22 = arith.truncf %20 : vector<8x256xf32> to vector<8x256xbf16>
    %c0_11 = arith.constant 0 : index
    %c0_12 = arith.constant 0 : index
    %23 = vector.load %arg5[%c0_11, %c0_12] : memref<256x64xbf16, #tpu.memory_space<vmem>>, vector<256x64xbf16>
    %cst_13 = arith.constant dense<0.000000e+00> : vector<8x64xf32>
    %24 = tpu.matmul %22, %23, %cst_13 {dimension_numbers = #tpu.dot_dimension_numbers<[1], [0], [0], [1], [0, 0, 1, 1], [], []>} : vector<8x256xbf16>, vector<256x64xbf16>, vector<8x64xf32> -> vector<8x64xf32>
    %25 = arith.addf %21, %24 : vector<8x64xf32>
    %c0_14 = arith.constant 0 : index
    %c0_15 = arith.constant 0 : index
    %26 = vector.load %arg8[%c0_14, %c0_15] : memref<8x64xf32, #tpu.memory_space<vmem>>, vector<8x64xf32>
    tpu.vector_store %arg8[%c0_14, %c0_15], %25 {strides = array<i32>} : memref<8x64xf32, #tpu.memory_space<vmem>>, vector<8x64xf32>,
    %c0_i32_16 = arith.constant 0 : i32
    %27 = arith.cmpi eq, %arg1, %c0_i32_16 : i32
    %28 = arith.extui %27 : i1 to i32
    %c0_i32_17 = arith.constant 0 : i32
    %29 = arith.cmpi ne, %28, %c0_i32_17 : i32
    scf.if %29 {
      %c0_18 = arith.constant 0 : index
      %c0_19 = arith.constant 0 : index
      %30 = vector.load %arg8[%c0_18, %c0_19] : memref<8x64xf32, #tpu.memory_space<vmem>>, vector<8x64xf32>
      %c0_20 = arith.constant 0 : index
      %c0_21 = arith.constant 0 : index
      %31 = vector.load %arg6[%c0_20, %c0_21] : memref<1x64xf32, #tpu.memory_space<vmem>>, vector<1x64xf32>
      %32 = vector.broadcast %31 : vector<1x64xf32> to vector<8x64xf32>
      %33 = arith.addf %30, %32 : vector<8x64xf32>
      %c0_22 = arith.constant 0 : index
      %c0_23 = arith.constant 0 : index
      %34 = vector.load %arg7[%c0_22, %c0_23] : memref<8x64xf32, #tpu.memory_space<vmem>>, vector<8x64xf32>
      tpu.vector_store %arg7[%c0_22, %c0_23], %33 {strides = array<i32>} : memref<8x64xf32, #tpu.memory_space<vmem>>, vector<8x64xf32>,
    } else {
    }
    return
  }
  func.func @transform_0(%arg0: i32, %arg1: i32) -> (i32, i32) {
    %c0_i32 = arith.constant 0 : i32
    %c0_i32_0 = arith.constant 0 : i32
    return %arg0, %c0_i32 : i32, i32
  }
  func.func @transform_1(%arg0: i32, %arg1: i32) -> (i32, i32) {
    %c0_i32 = arith.constant 0 : i32
    %c0_i32_0 = arith.constant 0 : i32
    return %c0_i32, %arg1 : i32, i32
  }
  func.func @transform_2(%arg0: i32, %arg1: i32) -> (i32, i32) {
    %c0_i32 = arith.constant 0 : i32
    %c0_i32_0 = arith.constant 0 : i32
    return %c0_i32, %arg1 : i32, i32
  }
  func.func @transform_3(%arg0: i32, %arg1: i32) -> (i32, i32) {
    %c0_i32 = arith.constant 0 : i32
    %c0_i32_0 = arith.constant 0 : i32
    return %arg1, %c0_i32 : i32, i32
  }
  func.func @transform_4(%arg0: i32, %arg1: i32) -> (i32, i32) {
    %c0_i32 = arith.constant 0 : i32
    %c0_i32_0 = arith.constant 0 : i32
    %c0_i32_1 = arith.constant 0 : i32
    return %c0_i32, %c0_i32_0 : i32, i32
  }
  func.func @transform_5(%arg0: i32, %arg1: i32) -> (i32, i32) {
    %c0_i32 = arith.constant 0 : i32
    %c0_i32_0 = arith.constant 0 : i32
    return %arg0, %c0_i32 : i32, i32
  }
}

module attributes {stable_mosaic.version = 11 : i64} {
  func.func @_mlp_kernel(%arg0: i32, %arg1: i32, %arg2: memref<8x64xf32, #tpu.memory_space<vmem>>, %arg3: memref<64x256xbf16, #tpu.memory_space<vmem>>, %arg4: memref<1x256xf32, #tpu.memory_space<vmem>>, %arg5: memref<256x64xbf16, #tpu.memory_space<vmem>>, %arg6: memref<1x64xf32, #tpu.memory_space<vmem>>, %arg7: memref<8x64xf32, #tpu.memory_space<vmem>>, %arg8: memref<8x64xf32, #tpu.memory_space<vmem>>) attributes {dimension_semantics = [#tpu.dimension_semantics<parallel>, #tpu.dimension_semantics<arbitrary>], iteration_bounds = array<i64: 2, 1>, scalar_prefetch = 0 : i64, scratch_operands = 1 : i64, tpu.core_type = #tpu.core_type<tc>, window_params = [{transform_indices = @transform_0, window_bounds = array<i64: 8, 64>}, {transform_indices = @transform_1, window_bounds = array<i64: 64, 256>}, {transform_indices = @transform_2, window_bounds = array<i64: 1, 256>}, {transform_indices = @transform_3, window_bounds = array<i64: 256, 64>}, {pipeline_mode = #tpu.pipeline_mode<synchronous>, transform_indices = @transform_4, window_bounds = array<i64: 1, 64>}, {transform_indices = @transform_5, window_bounds = array<i64: 8, 64>}]} {
    %c0_i32 = arith.constant 0 : i32
    %0 = arith.cmpi eq, %arg1, %c0_i32 : i32
    %1 = arith.extui %0 : i1 to i32
    %c0_i32_0 = arith.constant 0 : i32
    %2 = arith.cmpi ne, %1, %c0_i32_0 : i32
    scf.if %2 {
      %cst_18 = arith.constant 0.000000e+00 : f32
      %30 = vector.broadcast %cst_18 : f32 to vector<8x64xf32>
      %c0_19 = arith.constant 0 : index
      %c0_20 = arith.constant 0 : index
      %31 = vector.load %arg8[%c0_19, %c0_20] : memref<8x64xf32, #tpu.memory_space<vmem>>, vector<8x64xf32>
      tpu.vector_store %arg8[%c0_19, %c0_20], %30 {strides = array<i32>} : memref<8x64xf32, #tpu.memory_space<vmem>>, vector<8x64xf32>,
    } else {
    }
    %c0 = arith.constant 0 : index
    %c0_1 = arith.constant 0 : index
    %3 = vector.load %arg2[%c0, %c0_1] : memref<8x64xf32, #tpu.memory_space<vmem>>, vector<8x64xf32>
    %4 = arith.truncf %3 : vector<8x64xf32> to vector<8x64xbf16>
    %c0_2 = arith.constant 0 : index
    %c0_3 = arith.constant 0 : index
    %5 = vector.load %arg3[%c0_2, %c0_3] : memref<64x256xbf16, #tpu.memory_space<vmem>>, vector<64x256xbf16>
    %cst = arith.constant dense<0.000000e+00> : vector<8x256xf32>
    %6 = tpu.matmul %4, %5, %cst {dimension_numbers = #tpu.dot_dimension_numbers<[1], [0], [0], [1], [0, 0, 1, 1], [], []>} : vector<8x64xbf16>, vector<64x256xbf16>, vector<8x256xf32> -> vector<8x256xf32>
    %c0_4 = arith.constant 0 : index
    %c0_5 = arith.constant 0 : index
    %7 = vector.load %arg4[%c0_4, %c0_5] : memref<1x256xf32, #tpu.memory_space<vmem>>, vector<1x256xf32>
    %8 = vector.broadcast %7 : vector<1x256xf32> to vector<8x256xf32>
    %9 = arith.addf %6, %8 : vector<8x256xf32>
    %10 = arith.mulf %9, %9 : vector<8x256xf32>
    %cst_6 = arith.constant 0.0356774069 : f32
    %11 = vector.broadcast %cst_6 : f32 to vector<8x256xf32>
    %12 = arith.mulf %11, %10 : vector<8x256xf32>
    %cst_7 = arith.constant 0.797884583 : f32
    %13 = vector.broadcast %cst_7 : f32 to vector<8x256xf32>
    %14 = arith.addf %13, %12 : vector<8x256xf32>
    %15 = arith.mulf %9, %14 : vector<8x256xf32>
    %16 = math.tanh %15 : vector<8x256xf32>
    %cst_8 = arith.constant 5.000000e-01 : f32
    %17 = vector.broadcast %cst_8 : f32 to vector<8x256xf32>
    %18 = arith.mulf %17, %9 : vector<8x256xf32>
    %19 = arith.mulf %18, %16 : vector<8x256xf32>
    %20 = arith.addf %18, %19 : vector<8x256xf32>
    %c0_9 = arith.constant 0 : index
    %c0_10 = arith.constant 0 : index
    %21 = vector.load %arg8[%c0_9, %c0_10] : memref<8x64xf32, #tpu.memory_space<vmem>>, vector<8x64xf32>
    %22 = arith.truncf %20 : vector<8x256xf32> to vector<8x256xbf16>
    %c0_11 = arith.constant 0 : index
    %c0_12 = arith.constant 0 : index
    %23 = vector.load %arg5[%c0_11, %c0_12] : memref<256x64xbf16, #tpu.memory_space<vmem>>, vector<256x64xbf16>
    %cst_13 = arith.constant dense<0.000000e+00> : vector<8x64xf32>
    %24 = tpu.matmul %22, %23, %cst_13 {dimension_numbers = #tpu.dot_dimension_numbers<[1], [0], [0], [1], [0, 0, 1, 1], [], []>} : vector<8x256xbf16>, vector<256x64xbf16>, vector<8x64xf32> -> vector<8x64xf32>
    %25 = arith.addf %21, %24 : vector<8x64xf32>
    %c0_14 = arith.constant 0 : index
    %c0_15 = arith.constant 0 : index
    %26 = vector.load %arg8[%c0_14, %c0_15] : memref<8x64xf32, #tpu.memory_space<vmem>>, vector<8x64xf32>
    tpu.vector_store %arg8[%c0_14, %c0_15], %25 {strides = array<i32>} : memref<8x64xf32, #tpu.memory_space<vmem>>, vector<8x64xf32>,
    %c0_i32_16 = arith.constant 0 : i32
    %27 = arith.cmpi eq, %arg1, %c0_i32_16 : i32
    %28 = arith.extui %27 : i1 to i32
    %c0_i32_17 = arith.constant 0 : i32
    %29 = arith.cmpi ne, %28, %c0_i32_17 : i32
    scf.if %29 {
      %c0_18 = arith.constant 0 : index
      %c0_19 = arith.constant 0 : index
      %30 = vector.load %arg8[%c0_18, %c0_19] : memref<8x64xf32, #tpu.memory_space<vmem>>, vector<8x64xf32>
      %c0_20 = arith.constant 0 : index
      %c0_21 = arith.constant 0 : index
      %31 = vector.load %arg6[%c0_20, %c0_21] : memref<1x64xf32, #tpu.memory_space<vmem>>, vector<1x64xf32>
      %32 = vector.broadcast %31 : vector<1x64xf32> to vector<8x64xf32>
      %33 = arith.addf %30, %32 : vector<8x64xf32>
      %c0_22 = arith.constant 0 : index
      %c0_23 = arith.constant 0 : index
      %34 = vector.load %arg7[%c0_22, %c0_23] : memref<8x64xf32, #tpu.memory_space<vmem>>, vector<8x64xf32>
      tpu.vector_store %arg7[%c0_22, %c0_23], %33 {strides = array<i32>} : memref<8x64xf32, #tpu.memory_space<vmem>>, vector<8x64xf32>,
    } else {
    }
    return
  }
  func.func @transform_0(%arg0: i32, %arg1: i32) -> (i32, i32) {
    %c0_i32 = arith.constant 0 : i32
    %c0_i32_0 = arith.constant 0 : i32
    return %arg0, %c0_i32 : i32, i32
  }
  func.func @transform_1(%arg0: i32, %arg1: i32) -> (i32, i32) {
    %c0_i32 = arith.constant 0 : i32
    %c0_i32_0 = arith.constant 0 : i32
    return %c0_i32, %arg1 : i32, i32
  }
  func.func @transform_2(%arg0: i32, %arg1: i32) -> (i32, i32) {
    %c0_i32 = arith.constant 0 : i32
    %c0_i32_0 = arith.constant 0 : i32
    return %c0_i32, %arg1 : i32, i32
  }
  func.func @transform_3(%arg0: i32, %arg1: i32) -> (i32, i32) {
    %c0_i32 = arith.constant 0 : i32
    %c0_i32_0 = arith.constant 0 : i32
    return %arg1, %c0_i32 : i32, i32
  }
  func.func @transform_4(%arg0: i32, %arg1: i32) -> (i32, i32) {
    %c0_i32 = arith.constant 0 : i32
    %c0_i32_0 = arith.constant 0 : i32
    %c0_i32_1 = arith.constant 0 : i32
    return %c0_i32, %c0_i32_0 : i32, i32
  }
  func.func @transform_5(%arg0: i32, %arg1: i32) -> (i32, i32) {
    %c0_i32 = arith.constant 0 : i32
    %c0_i32_0 = arith.constant 0 : i32
    return %arg0, %c0_i32 : i32, i32
  }
}

</mosaic_0001>

<llo_original>
// kernel: gpt2_mlp.1
$region0: #{gpt2_mlp.1}
  #allocation0 [shape = 'u32[]', space=smem, size = 0x4, offset = 0x4, fixed_abs, tag = 'smem constant byte address 0x4 - core index']
  #allocation1 [shape = 'u32[144,128]{1,0:T(1,128)}', space=vmem, size = 0x12000, scoped, tag = 'internal scratch']
  #allocation2 [shape = 'f32[8,64]{1,0:T(8,128)}', space=vmem, size = 0x1000, scoped, tag = 'scratch operand']
  %s0 = inlined_call_operand.vmem [shape: f32[16,64], index: 0, kind: input, shape index: {}]
  %s1 = inlined_call_operand.vmem [shape: bf16[64,256], index: 1, kind: input, shape index: {}]
  %s2 = inlined_call_operand.vmem [shape: f32[1,256], index: 2, kind: input, shape index: {}]
  %s3 = inlined_call_operand.vmem [shape: bf16[256,64], index: 3, kind: input, shape index: {}]
  %s4 = inlined_call_operand.vmem [shape: f32[1,64], index: 4, kind: input, shape index: {}]
  %s5 = inlined_call_operand.hbm [shape: f32[16,64], index: 5, kind: output, shape index: {}]
  %s6 = sld [smem:[#allocation0]]
  $region61: #{gpt2_mlp.1} parent=0
    _
  %s8 = ssub.s32 1, %s6
  %s9 = scalar_select 0, %s8, %s6
  $region1: #{gpt2_mlp.1} parent=0
    #allocation3 [shape = 'u8[8192]{0}', space=vmem, size = 0x2000, scoped, tag = 'output window, operand 0']
    #allocation4 [shape = 's32[2]{0}', space=sflag, size = 0x8, scoped, tag = 'scoped memory for gpt2_mlp.1']
    %10 = vsyncpa [#allocation4], 0
    %s11 = scalar_lea.sflag [#allocation4], 1
    %12 = vsyncpa %s11, 0
    loop: start=0, step=1, limit=4
    $region2: #{gpt2_mlp.1} parent=1 // loop_pre_header
      _
    $region3: #{gpt2_mlp.1} parent=1 // loop_header
      %s14 = sphi 0, %s18
      %p15 = scmp.ge.s32.totalorder %s14, 4
      %s21 = sphi 0, %s33
      %s22 = sphi 0, %s29
      %s23 = sphi 0, %s21
      %s24 = sphi 0, %s22
      %s25 = sphi 0, %s23
      %s26 = sphi 0, %s24
      %s36 = sphi 0, %s38
      %s39 = sphi 0, %s36
      %s40 = sphi 0, %s39
      %s56 = sphi 0, %s40
      %s62 = sphi 0, %s64
      %s65 = sphi 0, %s62
      %s66 = sphi 0, %s65
      %s82 = sphi 0, %s66
      %s88 = sphi 0, %s90
      %s91 = sphi 0, %s88
      %s92 = sphi 0, %s91
      %s108 = sphi 0, %s92
      %s114 = sphi 0, %s116
      %s117 = sphi 0, %s114
      %s118 = sphi 0, %s117
      %s134 = sphi 0, %s118
      %s138 = sphi 0, %s138
      %s140 = sphi 0, %s138
      %s141 = sphi 0, %s140
      %s155 = sphi 0, %s141
      %s161 = sphi 0, %s163
      %s164 = sphi 0, %s161
      %s165 = sphi 0, %s164
      %s181 = sphi 0, %s165
    $region4: #{gpt2_mlp.1} parent=1 // loop_header_branch
      %17 = sbr.rel (%p15) target = $region8
    $region5: #{gpt2_mlp.1} parent=1 // loop_body
      %s19 = ssub.s32 %s14, 1
      %s20 = ssub.s32 %s14, 2
      %s27 = sadd.s32 1, %s22
      %p28 = scmp.ge.s32.totalorder %s27, 1
      %s29 = scalar_select %p28, 0, %s27
      %s30 = sadd.s32 1, %s21
      %s31 = scalar_select %p28, %s30, %s21
      %p32 = scmp.ge.s32.totalorder %s31, 2
      %s33 = scalar_select %p32, 0, %s31
      %s34 = ssub.s32 %s21, %s33
      %p35 = scmp.eq.s32.totalorder %s34, 0
      %s37 = sadd.s32 %s36, 1
      %s38 = scalar_select %p35, %s36, %s37
      %p41 = pneg %p35
      %p42 = scmp.eq.s32.totalorder %s14, 1
      %p43 = por %p41, %p42
      %p44 = scmp.ne.s32.totalorder %s36, %s39
      %p45 = scmp.eq.s32.totalorder %s14, 0
      %p46 = por %p44, %p45
      %p47 = scmp.ne.s32.totalorder %s36, %s39
      %p48 = scmp.eq.s32.totalorder %s19, 1
      %p49 = por %p47, %p48
      %p50 = scmp.ne.s32.totalorder %s39, %s40
      %p51 = scmp.eq.s32.totalorder %s19, 0
      %p52 = por %p50, %p51
      %p53 = scmp.ne.s32.totalorder %s39, %s40
      %p54 = scmp.eq.s32.totalorder %s20, 1
      %p55 = por %p53, %p54
      %p57 = scmp.ne.s32.totalorder %s40, %s56
      %p58 = scmp.eq.s32.totalorder %s20, 0
      %p59 = por %p57, %p58
      %s60 = ssub.s32 %s22, %s29
      %p61 = scmp.eq.s32.totalorder %s60, 0
      %s63 = sadd.s32 %s62, 1
      %s64 = scalar_select %p61, %s62, %s63
      %p67 = pneg %p61
      %p68 = scmp.eq.s32.totalorder %s14, 1
      %p69 = por %p67, %p68
      %p70 = scmp.ne.s32.totalorder %s62, %s65
      %p71 = scmp.eq.s32.totalorder %s14, 0
      %p72 = por %p70, %p71
      %p73 = scmp.ne.s32.totalorder %s62, %s65
      %p74 = scmp.eq.s32.totalorder %s19, 1
      %p75 = por %p73, %p74
      %p76 = scmp.ne.s32.totalorder %s65, %s66
      %p77 = scmp.eq.s32.totalorder %s19, 0
      %p78 = por %p76, %p77
      %p79 = scmp.ne.s32.totalorder %s65, %s66
      %p80 = scmp.eq.s32.totalorder %s20, 1
      %p81 = por %p79, %p80
      %p83 = scmp.ne.s32.totalorder %s66, %s82
      %p84 = scmp.eq.s32.totalorder %s20, 0
      %p85 = por %p83, %p84
      %s86 = ssub.s32 %s22, %s29
      %p87 = scmp.eq.s32.totalorder %s86, 0
      %s89 = sadd.s32 %s88, 1
      %s90 = scalar_select %p87, %s88, %s89
      %p93 = pneg %p87
      %p94 = scmp.eq.s32.totalorder %s14, 1
      %p95 = por %p93, %p94
      %p96 = scmp.ne.s32.totalorder %s88, %s91
      %p97 = scmp.eq.s32.totalorder %s14, 0
      %p98 = por %p96, %p97
      %p99 = scmp.ne.s32.totalorder %s88, %s91
      %p100 = scmp.eq.s32.totalorder %s19, 1
      %p101 = por %p99, %p100
      %p102 = scmp.ne.s32.totalorder %s91, %s92
      %p103 = scmp.eq.s32.totalorder %s19, 0
      %p104 = por %p102, %p103
      %p105 = scmp.ne.s32.totalorder %s91, %s92
      %p106 = scmp.eq.s32.totalorder %s20, 1
      %p107 = por %p105, %p106
      %p109 = scmp.ne.s32.totalorder %s92, %s108
      %p110 = scmp.eq.s32.totalorder %s20, 0
      %p111 = por %p109, %p110
      %s112 = ssub.s32 %s22, %s29
      %p113 = scmp.eq.s32.totalorder %s112, 0
      %s115 = sadd.s32 %s114, 1
      %s116 = scalar_select %p113, %s114, %s115
      %p119 = pneg %p113
      %p120 = scmp.eq.s32.totalorder %s14, 1
      %p121 = por %p119, %p120
      %p122 = scmp.ne.s32.totalorder %s114, %s117
      %p123 = scmp.eq.s32.totalorder %s14, 0
      %p124 = por %p122, %p123
      %p125 = scmp.ne.s32.totalorder %s114, %s117
      %p126 = scmp.eq.s32.totalorder %s19, 1
      %p127 = por %p125, %p126
      %p128 = scmp.ne.s32.totalorder %s117, %s118
      %p129 = scmp.eq.s32.totalorder %s19, 0
      %p130 = por %p128, %p129
      %p131 = scmp.ne.s32.totalorder %s117, %s118
      %p132 = scmp.eq.s32.totalorder %s20, 1
      %p133 = por %p131, %p132
      %p135 = scmp.ne.s32.totalorder %s118, %s134
      %p136 = scmp.eq.s32.totalorder %s20, 0
      %p137 = por %p135, %p136
      %s139 = sadd.s32 %s138, 1
      %p142 = scmp.eq.s32.totalorder %s14, 1
      %p143 = scmp.ne.s32.totalorder %s138, %s140
      %p144 = scmp.eq.s32.totalorder %s14, 0
      %p145 = por %p143, %p144
      %p146 = scmp.ne.s32.totalorder %s138, %s140
      %p147 = scmp.eq.s32.totalorder %s19, 1
      %p148 = por %p146, %p147
      %p149 = scmp.ne.s32.totalorder %s140, %s141
      %p150 = scmp.eq.s32.totalorder %s19, 0
      %p151 = por %p149, %p150
      %p152 = scmp.ne.s32.totalorder %s140, %s141
      %p153 = scmp.eq.s32.totalorder %s20, 1
      %p154 = por %p152, %p153
      %p156 = scmp.ne.s32.totalorder %s141, %s155
      %p157 = scmp.eq.s32.totalorder %s20, 0
      %p158 = por %p156, %p157
      %s159 = ssub.s32 %s21, %s33
      %p160 = scmp.eq.s32.totalorder %s159, 0
      %s162 = sadd.s32 %s161, 1
      %s163 = scalar_select %p160, %s161, %s162
      %p166 = pneg %p160
      %p167 = scmp.eq.s32.totalorder %s14, 1
      %p168 = por %p166, %p167
      %p169 = scmp.ne.s32.totalorder %s161, %s164
      %p170 = scmp.eq.s32.totalorder %s14, 0
      %p171 = por %p169, %p170
      %p172 = scmp.ne.s32.totalorder %s161, %s164
      %p173 = scmp.eq.s32.totalorder %s19, 1
      %p174 = por %p172, %p173
      %p175 = scmp.ne.s32.totalorder %s164, %s165
      %p176 = scmp.eq.s32.totalorder %s19, 0
      %p177 = por %p175, %p176
      %p178 = scmp.ne.s32.totalorder %s164, %s165
      %p179 = scmp.eq.s32.totalorder %s20, 1
      %p180 = por %p178, %p179
      %p182 = scmp.ne.s32.totalorder %s165, %s181
      %p183 = scmp.eq.s32.totalorder %s20, 0
      %p184 = por %p182, %p183
      %p185 = scmp.le.s32.totalorder 1, %s14
      %p186 = scmp.lt.s32.totalorder %s14, 3
      %p187 = pnand %p185, %p186
      %p188 = pneg %p187
      // Predicated region
      $region9: #{gpt2_mlp.1} parent=5 // pred_check
        _
      $region10: #{gpt2_mlp.1} parent=5 // pred_check_branch
        %190 = sbr.rel (%p187) target = $region12
      $region11: #{gpt2_mlp.1} parent=5 // pred_region
        %s191 = ssub.s32 %s14, 1
        // Predicated region
        $region13: #{gpt2_mlp.1} parent=11 // pred_check
          %p192 = pneg %p78
        $region14: #{gpt2_mlp.1} parent=11 // pred_check_branch
          %194 = sbr.rel (%p192) target = $region16
        $region15: #{gpt2_mlp.1} parent=11 // pred_region
          %s195 = smul.u32 2, %s24
          %p196 = scmp.lt.s32.totalorder %s195, 1
          %s197 = scalar_select %p196, %s195, 1
          %s198 = smul.addr %s197, 4
          %s199 = scalar_lea.vmem %s1, %s198
          %s200 = smul.u32 2, %s24
        $region16: #{gpt2_mlp.1} parent=11 // pred_fallthru
          _
        // Predicated region
        $region17: #{gpt2_mlp.1} parent=11 // pred_check
          %p201 = pneg %p104
        $region18: #{gpt2_mlp.1} parent=11 // pred_check_branch
          %203 = sbr.rel (%p201) target = $region20
        $region19: #{gpt2_mlp.1} parent=11 // pred_region
          %s204 = smul.u32 2, %s24
          %p205 = scmp.lt.s32.totalorder %s204, 1
          %s206 = scalar_select %p205, %s204, 1
          %s207 = scalar_lea.vmem %s2, %s206
          %s208 = smul.u32 2, %s24
        $region20: #{gpt2_mlp.1} parent=11 // pred_fallthru
          _
        // Predicated region
        $region21: #{gpt2_mlp.1} parent=11 // pred_check
          %p209 = pneg %p130
        $region22: #{gpt2_mlp.1} parent=11 // pred_check_branch
          %211 = sbr.rel (%p209) target = $region24
        $region23: #{gpt2_mlp.1} parent=11 // pred_region
          %s212 = smul.u32 32, %s24
          %p213 = scmp.lt.s32.totalorder %s212, 31
          %s214 = scalar_select %p213, %s212, 31
          %s215 = smul.addr %s214, 4
          %s216 = scalar_lea.vmem %s3, %s215
          %s217 = smul.u32 32, %s24
        $region24: #{gpt2_mlp.1} parent=11 // pred_fallthru
          _
        // Predicated region
        $region25: #{gpt2_mlp.1} parent=11 // pred_check
          %p218 = pneg %p151
        $region26: #{gpt2_mlp.1} parent=11 // pred_check_branch
          %220 = sbr.rel (%p218) target = $region28
        $region27: #{gpt2_mlp.1} parent=11 // pred_region
          _
        $region28: #{gpt2_mlp.1} parent=11 // pred_fallthru
          _
      $region12: #{gpt2_mlp.1} parent=5 // pred_fallthru
        _
      %p221 = scmp.lt.s32.totalorder %s14, 2
      // Predicated region
      $region29: #{gpt2_mlp.1} parent=5 // pred_check
        %p222 = pneg %p221
      $region30: #{gpt2_mlp.1} parent=5 // pred_check_branch
        %224 = sbr.rel (%p222) target = $region32
      $region31: #{gpt2_mlp.1} parent=5 // pred_region
        // Predicated region
        $region33: #{gpt2_mlp.1} parent=31 // pred_check
          %p225 = pneg %p46
        $region34: #{gpt2_mlp.1} parent=31 // pred_check_branch
          %227 = sbr.rel (%p225) target = $region36
        $region35: #{gpt2_mlp.1} parent=31 // pred_region
          %p228 = scmp.lt.s32.totalorder %s21, 1
          %s229 = scalar_select %p228, %s21, 1
          %s230 = smul.addr %s229, 8
          %s231 = scalar_lea.vmem %s0, %s230
        $region36: #{gpt2_mlp.1} parent=31 // pred_fallthru
          _
      $region32: #{gpt2_mlp.1} parent=5 // pred_fallthru
        _
      %p232 = scmp.le.s32.totalorder 1, %s14
      %p233 = scmp.lt.s32.totalorder %s14, 3
      %p234 = pnand %p232, %p233
      %p235 = pneg %p234
      // Predicated region
      $region37: #{gpt2_mlp.1} parent=5 // pred_check
        _
      $region38: #{gpt2_mlp.1} parent=5 // pred_check_branch
        %237 = sbr.rel (%p234) target = $region40
      $region39: #{gpt2_mlp.1} parent=5 // pred_region
        %s238 = ssub.s32 %s14, 1
        %p239 = scmp.lt.s32.totalorder %s23, 1
        %s240 = scalar_select %p239, %s23, 1
        %s241 = smul.addr %s240, 8
        %s242 = scalar_lea.vmem %s0, %s241
        %p243 = pneg %p52
        %p244 = pneg %p49
        %s245 = smul.u32 2, %s24
        %p246 = scmp.lt.s32.totalorder %s245, 1
        %s247 = scalar_select %p246, %s245, 1
        %s248 = smul.addr %s247, 4
        %s249 = scalar_lea.vmem %s1, %s248
        %p250 = pneg %p78
        %p251 = pneg %p75
        %s252 = smul.u32 2, %s24
        %p253 = scmp.lt.s32.totalorder %s252, 1
        %s254 = scalar_select %p253, %s252, 1
        %s255 = scalar_lea.vmem %s2, %s254
        %p256 = pneg %p104
        %p257 = pneg %p101
        %s258 = smul.u32 32, %s24
        %p259 = scmp.lt.s32.totalorder %s258, 31
        %s260 = scalar_select %p259, %s258, 31
        %s261 = smul.addr %s260, 4
        %s262 = scalar_lea.vmem %s3, %s261
        %p263 = pneg %p130
        %p264 = pneg %p127
        %p265 = pneg %p151
        %p266 = pneg %p148
        %p267 = pneg %p177
        %p268 = pneg %p174
        %s269 = sand.u32 %s164, 1
        %s270 = scalar_lea.sflag [#allocation4], %s269
        %s271 = sand.u32 %s164, 1
        %s272 = smul.addr %s271, 8
        %s273 = scalar_lea.vmem [#allocation3], %s272
        %p274 = scmp.lt.s32.totalorder %s23, 1
        %s275 = scalar_select %p274, %s23, 1
        %s276 = smul.addr %s275, 8
        %s277 = scalar_lea.vmem %s0, %s276
        %s278 = smul.u32 2, %s24
        %p279 = scmp.lt.s32.totalorder %s278, 1
        %s280 = scalar_select %p279, %s278, 1
        %s281 = smul.addr %s280, 4
        %s282 = scalar_lea.vmem %s1, %s281
        %s283 = smul.u32 2, %s24
        %s284 = smul.u32 2, %s24
        %p285 = scmp.lt.s32.totalorder %s284, 1
        %s286 = scalar_select %p285, %s284, 1
        %s287 = scalar_lea.vmem %s2, %s286
        %s288 = smul.u32 2, %s24
        %s289 = smul.u32 32, %s24
        %p290 = scmp.lt.s32.totalorder %s289, 31
        %s291 = scalar_select %p290, %s289, 31
        %s292 = smul.addr %s291, 4
        %s293 = scalar_lea.vmem %s3, %s292
        %s294 = smul.u32 32, %s24
        %p296 = scmp.eq.s32.totalorder %s24, 0
        // Predicated region
        $region41: #{gpt2_mlp.1} parent=39 // pred_check
          %p297 = pneg %p296
        $region42: #{gpt2_mlp.1} parent=39 // pred_check_branch
          %299 = sbr.rel (%p297) target = $region44
        $region43: #{gpt2_mlp.1} parent=39 // pred_region
          %vm300 = vcmask 523264
          %301 = vst.msk [vmem:[#allocation2] sm:$0xff] %vm300, 0.0
        $region44: #{gpt2_mlp.1} parent=39 // pred_fallthru
          _
        %v302 = vld [vmem:[%s277] sm:$0xff]
        %v303 = vpack.c.bf16 %v302, %v302
        %v304 = vld [vmem:[%s282] sm:$0xff]
        %v305 = vld [vmem:[%s282 + $0x8] sm:$0xff]
        %v306 = vld [vmem:[%s282 + $0x10] sm:$0xff]
        %v307 = vld [vmem:[%s282 + $0x18] sm:$0xff]
        %v308 = vld [vmem:[%s282 + $0x20] sm:$0xff]
        %v309 = vld [vmem:[%s282 + $0x28] sm:$0xff]
        %v310 = vld [vmem:[%s282 + $0x30] sm:$0xff]
        %v311 = vld [vmem:[%s282 + $0x38] sm:$0xff]
        %v312 = vld [vmem:[%s287] sm:$0x3]
        %v314 = vlaneseq
        %v315 = vshrl.u32 %v314, 7
        %v316 = vsub.s32 0, %v315
        %v317 = vrot.slane %v312, %v316
        %v318 = vlaneseq
        %v319 = vshrl.u32 %v318, 7
        %v320 = vsub.s32 1, %v319
        %v321 = vrot.slane %v312, %v320
        %v332 = vunpack.c.l.b16 %v304
        %v333 = vunpack.c.h.b16 %v304
        %v334 = vunpack.c.l.b16 %v305
        %v335 = vunpack.c.h.b16 %v305
        %v336 = vunpack.c.l.b16 %v306
        %v337 = vunpack.c.h.b16 %v306
        %v338 = vunpack.c.l.b16 %v307
        %v339 = vunpack.c.h.b16 %v307
        %v340 = vunpack.c.l.b16 %v308
        %v341 = vunpack.c.h.b16 %v308
        %v342 = vunpack.c.l.b16 %v309
        %v343 = vunpack.c.h.b16 %v309
        %v344 = vunpack.c.l.b16 %v310
        %v345 = vunpack.c.h.b16 %v310
        %v346 = vunpack.c.l.b16 %v311
        %v347 = vunpack.c.h.b16 %v311
        %v348 = vpack.c.b16 %v334, %v332
        %v349 = vpack.c.b16 %v335, %v333
        %v350 = vpack.c.b16 %v338, %v336
        %v351 = vpack.c.b16 %v339, %v337
        %v352 = vpack.c.b16 %v342, %v340
        %v353 = vpack.c.b16 %v343, %v341
        %v354 = vpack.c.b16 %v346, %v344
        %v355 = vpack.c.b16 %v347, %v345
        %vm364 = vcmask 523264
        %v366 = vsel %vm364, %v303, 0
        %368 = vmatprep.subr.bf16.mxu0 %v349
        %369 = vmatpush1.bf16.msra.mxu0 %v348
        %370 = vmatprep.subr.bf16.mxu0 %v351
        %371 = vmatpush1.bf16.msra.mxu0 %v350
        %372 = vmatprep.subr.bf16.mxu0 %v353
        %373 = vmatpush1.bf16.msra.mxu0 %v352
        %374 = vmatprep.subr.bf16.mxu0 %v355
        %375 = vmatpush1.bf16.msra.mxu0 %v354
        %376 = vmatprep.subr.bf16.mxu0 0
        %377 = vmatpush1.bf16.msra.mxu0 0
        %378 = vmatprep.subr.bf16.mxu0 0
        %379 = vmatpush1.bf16.msra.mxu0 0
        %380 = vmatprep.subr.bf16.mxu0 0
        %381 = vmatpush1.bf16.msra.mxu0 0
        %382 = vmatprep.subr.bf16.mxu0 0
        %383 = vmatpush1.bf16.msra.mxu0 0
        %384 = vmatprep.subr.bf16.mxu0 0
        %385 = vmatpush1.bf16.msra.mxu0 0
        %386 = vmatprep.subr.bf16.mxu0 0
        %387 = vmatpush1.bf16.msra.mxu0 0
        %388 = vmatprep.subr.bf16.mxu0 0
        %389 = vmatpush1.bf16.msra.mxu0 0
        %390 = vmatprep.subr.bf16.mxu0 0
        %391 = vmatpush1.bf16.msra.mxu0 0
        %392 = vmatprep.subr.bf16.mxu0 0
        %393 = vmatpush1.bf16.msra.mxu0 0
        %394 = vmatprep.subr.bf16.mxu0 0
        %395 = vmatpush1.bf16.msra.mxu0 0
        %396 = vmatprep.subr.bf16.mxu0 0
        %397 = vmatpush1.bf16.msra.mxu0 0
        %398 = vmatprep.subr.bf16.mxu0 0
        %399 = vmatpush1.bf16.msra.mxu0 0
        %400 = vmatprep.mubr.bf16.mxu0 0
        %401 = vmatmul.mubr.bf16.gmra.mrb[0].mxu0 %v366
        %v402 = vpop.f32.mrb[0].mxu0
        %v403 = vadd.f32 %v317, %v402
        %v404 = vpop.f32.mrb[0].mxu0
        %v405 = vadd.f32 %v321, %v404
        %v406 = vpop.f32.mrb[0].mxu0
        %v407 = vpop.f32.mrb[0].mxu0
        %408 = vdwg.mxu0
        %v409 = vmul.f32 %v403, %v403
        %v410 = vmul.f32 %v405, %v405
        %v411 = vmul.f32 %v409, 0.035677407
        %v412 = vmul.f32 %v410, 0.035677407
        %v413 = vadd.f32 %v411, 0.7978846
        %v414 = vadd.f32 %v412, 0.7978846
        %v415 = vmul.f32 %v403, %v413
        %v416 = vmul.f32 %v405, %v414
        %v417 = vtanh.pop %v415
        %v418 = vtanh.pop %v416
        %v419 = vmul.f32 %v403, 0.5
        %v420 = vmul.f32 %v405, 0.5
        %v421 = vmul.f32 %v419, %v417
        %v422 = vmul.f32 %v420, %v418
        %v423 = vadd.f32 %v419, %v421
        %v424 = vadd.f32 %v420, %v422
        %v425 = vld [vmem:[#allocation2] sm:$0xff]
        %v426 = vpack.c.bf16 %v423, %v423
        %v427 = vpack.c.bf16 %v424, %v424
        %v428 = vld [vmem:[%s293] sm:$0xf]
        %v429 = vld [vmem:[%s293 + $0x4] sm:$0xf]
        %v430 = vld [vmem:[%s293 + $0x8] sm:$0xf]
        %v431 = vld [vmem:[%s293 + $0xc] sm:$0xf]
        %v432 = vld [vmem:[%s293 + $0x10] sm:$0xf]
        %v433 = vld [vmem:[%s293 + $0x14] sm:$0xf]
        %v434 = vld [vmem:[%s293 + $0x18] sm:$0xf]
        %v435 = vld [vmem:[%s293 + $0x1c] sm:$0xf]
        %v436 = vld [vmem:[%s293 + $0x20] sm:$0xf]
        %v437 = vld [vmem:[%s293 + $0x24] sm:$0xf]
        %v438 = vld [vmem:[%s293 + $0x28] sm:$0xf]
        %v439 = vld [vmem:[%s293 + $0x2c] sm:$0xf]
        %v440 = vld [vmem:[%s293 + $0x30] sm:$0xf]
        %v441 = vld [vmem:[%s293 + $0x34] sm:$0xf]
        %v442 = vld [vmem:[%s293 + $0x38] sm:$0xf]
        %v443 = vld [vmem:[%s293 + $0x3c] sm:$0xf]
        %v444 = vld [vmem:[%s293 + $0x40] sm:$0xf]
        %v445 = vld [vmem:[%s293 + $0x44] sm:$0xf]
        %v446 = vld [vmem:[%s293 + $0x48] sm:$0xf]
        %v447 = vld [vmem:[%s293 + $0x4c] sm:$0xf]
        %v448 = vld [vmem:[%s293 + $0x50] sm:$0xf]
        %v449 = vld [vmem:[%s293 + $0x54] sm:$0xf]
        %v450 = vld [vmem:[%s293 + $0x58] sm:$0xf]
        %v451 = vld [vmem:[%s293 + $0x5c] sm:$0xf]
        %v452 = vld [vmem:[%s293 + $0x60] sm:$0xf]
        %v453 = vld [vmem:[%s293 + $0x64] sm:$0xf]
        %v454 = vld [vmem:[%s293 + $0x68] sm:$0xf]
        %v455 = vld [vmem:[%s293 + $0x6c] sm:$0xf]
        %v456 = vld [vmem:[%s293 + $0x70] sm:$0xf]
        %v457 = vld [vmem:[%s293 + $0x74] sm:$0xf]
        %v458 = vld [vmem:[%s293 + $0x78] sm:$0xf]
        %v459 = vld [vmem:[%s293 + $0x7c] sm:$0xf]
        %v492 = vunpack.c.l.b16 %v428
        %v493 = vunpack.c.l.b16 %v429
        %v494 = vunpack.c.l.b16 %v430
        %v495 = vunpack.c.l.b16 %v431
        %v496 = vunpack.c.l.b16 %v432
        %v497 = vunpack.c.l.b16 %v433
        %v498 = vunpack.c.l.b16 %v434
        %v499 = vunpack.c.l.b16 %v435
        %v500 = vunpack.c.l.b16 %v436
        %v501 = vunpack.c.l.b16 %v437
        %v502 = vunpack.c.l.b16 %v438
        %v503 = vunpack.c.l.b16 %v439
        %v504 = vunpack.c.l.b16 %v440
        %v505 = vunpack.c.l.b16 %v441
        %v506 = vunpack.c.l.b16 %v442
        %v507 = vunpack.c.l.b16 %v443
        %v508 = vunpack.c.l.b16 %v444
        %v509 = vunpack.c.l.b16 %v445
        %v510 = vunpack.c.l.b16 %v446
        %v511 = vunpack.c.l.b16 %v447
        %v512 = vunpack.c.l.b16 %v448
        %v513 = vunpack.c.l.b16 %v449
        %v514 = vunpack.c.l.b16 %v450
        %v515 = vunpack.c.l.b16 %v451
        %v516 = vunpack.c.l.b16 %v452
        %v517 = vunpack.c.l.b16 %v453
        %v518 = vunpack.c.l.b16 %v454
        %v519 = vunpack.c.l.b16 %v455
        %v520 = vunpack.c.l.b16 %v456
        %v521 = vunpack.c.l.b16 %v457
        %v522 = vunpack.c.l.b16 %v458
        %v523 = vunpack.c.l.b16 %v459
        %v524 = vpack.c.b16 %v493, %v492
        %v525 = vpack.c.b16 %v495, %v494
        %v526 = vpack.c.b16 %v497, %v496
        %v527 = vpack.c.b16 %v499, %v498
        %v528 = vpack.c.b16 %v501, %v500
        %v529 = vpack.c.b16 %v503, %v502
        %v530 = vpack.c.b16 %v505, %v504
        %v531 = vpack.c.b16 %v507, %v506
        %v532 = vpack.c.b16 %v509, %v508
        %v533 = vpack.c.b16 %v511, %v510
        %v534 = vpack.c.b16 %v513, %v512
        %v535 = vpack.c.b16 %v515, %v514
        %v536 = vpack.c.b16 %v517, %v516
        %v537 = vpack.c.b16 %v519, %v518
        %v538 = vpack.c.b16 %v521, %v520
        %v539 = vpack.c.b16 %v523, %v522
        %556 = vmatprep.subr.bf16.mxu0 0
        %557 = vmatpush1.bf16.msra.mxu0 %v524
        %558 = vmatprep.subr.bf16.mxu0 0
        %559 = vmatpush1.bf16.msra.mxu0 %v525
        %560 = vmatprep.subr.bf16.mxu0 0
        %561 = vmatpush1.bf16.msra.mxu0 %v526
        %562 = vmatprep.subr.bf16.mxu0 0
        %563 = vmatpush1.bf16.msra.mxu0 %v527
        %564 = vmatprep.subr.bf16.mxu0 0
        %565 = vmatpush1.bf16.msra.mxu0 %v528
        %566 = vmatprep.subr.bf16.mxu0 0
        %567 = vmatpush1.bf16.msra.mxu0 %v529
        %568 = vmatprep.subr.bf16.mxu0 0
        %569 = vmatpush1.bf16.msra.mxu0 %v530
        %570 = vmatprep.subr.bf16.mxu0 0
        %571 = vmatpush1.bf16.msra.mxu0 %v531
        %572 = vmatprep.subr.bf16.mxu0 0
        %573 = vmatpush1.bf16.msra.mxu0 %v532
        %574 = vmatprep.subr.bf16.mxu0 0
        %575 = vmatpush1.bf16.msra.mxu0 %v533
        %576 = vmatprep.subr.bf16.mxu0 0
        %577 = vmatpush1.bf16.msra.mxu0 %v534
        %578 = vmatprep.subr.bf16.mxu0 0
        %579 = vmatpush1.bf16.msra.mxu0 %v535
        %580 = vmatprep.subr.bf16.mxu0 0
        %581 = vmatpush1.bf16.msra.mxu0 %v536
        %582 = vmatprep.subr.bf16.mxu0 0
        %583 = vmatpush1.bf16.msra.mxu0 %v537
        %584 = vmatprep.subr.bf16.mxu0 0
        %585 = vmatpush1.bf16.msra.mxu0 %v538
        %586 = vmatprep.subr.bf16.mxu0 0
        %587 = vmatpush1.bf16.msra.mxu0 %v539
        %588 = vmatprep.mubr.bf16.mxu0 %v427
        %589 = vmatmul.mubr.bf16.gmra.mrb[0].mxu0 %v426
        %v590 = vpop.f32.mrb[0].mxu0
        %v591 = vadd.f32 0.0, %v590
        %v592 = vpop.f32.mrb[0].mxu0
        %v593 = vpop.f32.mrb[0].mxu0
        %v594 = vpop.f32.mrb[0].mxu0
        %595 = vdwg.mxu0
        %v596 = vadd.f32 %v425, %v591
        %597 = vst.msk [vmem:[#allocation2] sm:$0xff] %vm364, %v596
        // Predicated region
        $region45: #{gpt2_mlp.1} parent=39 // pred_check
          %p598 = pneg %p296
        $region46: #{gpt2_mlp.1} parent=39 // pred_check_branch
          %600 = sbr.rel (%p598) target = $region48
        $region47: #{gpt2_mlp.1} parent=39 // pred_region
          %v601 = vld [vmem:[#allocation2] sm:$0xff]
          %v602 = vld [vmem:[%s4] sm:$0x1]
          %v604 = vlaneseq
          %v605 = vshrl.u32 %v604, 7
          %v606 = vsub.s32 0, %v605
          %v607 = vrot.slane %v602, %v606
          %v609 = vadd.f32 %v601, %v607
          %610 = vst.msk [vmem:[%s273] sm:$0xff] %vm364, %v609
        $region48: #{gpt2_mlp.1} parent=39 // pred_fallthru
          _
        %s611 = sand.u32 %s164, 1
        %s612 = scalar_lea.sflag [#allocation4], %s611
        %s613 = sand.u32 %s164, 1
        %s614 = smul.addr %s613, 8
        %s615 = scalar_lea.vmem [#allocation3], %s614
        // Predicated region
        $region49: #{gpt2_mlp.1} parent=39 // pred_check
          %p616 = pneg %p174
        $region50: #{gpt2_mlp.1} parent=39 // pred_check_branch
          %618 = sbr.rel (%p616) target = $region52
        $region51: #{gpt2_mlp.1} parent=39 // pred_region
          %s620 = ssub.s32 128, 128
          %621 = vsyncadd %s612, %s620
          %s622 = smul.addr %s23, 128
          %s623 = scalar_lea.hbm %s5, %s622
          %s625 = sshll.u32 %s615, 4
          %s626 = int_to_ptr.vmem [resolvable:$true] %s625
          %628 = dma.vmem_to_hbm [thread:$0]  %s626, 128, %s623, %s612
        $region52: #{gpt2_mlp.1} parent=39 // pred_fallthru
          _
      $region40: #{gpt2_mlp.1} parent=5 // pred_fallthru
        _
      %p629 = scmp.le.s32.totalorder 2, %s14
      // Predicated region
      $region53: #{gpt2_mlp.1} parent=5 // pred_check
        %p630 = pneg %p629
      $region54: #{gpt2_mlp.1} parent=5 // pred_check_branch
        %632 = sbr.rel (%p630) target = $region56
      $region55: #{gpt2_mlp.1} parent=5 // pred_region
        %s633 = ssub.s32 %s14, 2
        // Predicated region
        $region57: #{gpt2_mlp.1} parent=55 // pred_check
          %p634 = pneg %p180
        $region58: #{gpt2_mlp.1} parent=55 // pred_check_branch
          %636 = sbr.rel (%p634) target = $region60
        $region59: #{gpt2_mlp.1} parent=55 // pred_region
          %s637 = sand.u32 %s165, 1
          %s638 = scalar_lea.sflag [#allocation4], %s637
          %s639 = sand.u32 %s165, 1
          %s640 = smul.addr %s639, 8
          %s641 = scalar_lea.vmem [#allocation3], %s640
          %642 = dma.done %s638, 128
        $region60: #{gpt2_mlp.1} parent=55 // pred_fallthru
          _
      $region56: #{gpt2_mlp.1} parent=5 // pred_fallthru
        _
    $region6: #{gpt2_mlp.1} parent=1 // loop_footer
      %s18 = sadd.s32 1, %s14
    $region7: #{gpt2_mlp.1} parent=1 // loop_footer_branch
      %13 = sbr.rel target = $region3
    $region8: #{gpt2_mlp.1} parent=1 // loop_exit
      _
    %643 = vsyncpa [#allocation4], 1
    %s644 = scalar_lea.sflag [#allocation4], 1
    %645 = vsyncpa %s644, 1

// kernel: gpt2_mlp.1
$region0: #{gpt2_mlp.1}
  #allocation0 [shape = 'u32[]', space=smem, size = 0x4, offset = 0x4, fixed_abs, tag = 'smem constant byte address 0x4 - core index']
  #allocation1 [shape = 'u32[144,128]{1,0:T(1,128)}', space=vmem, size = 0x12000, scoped, tag = 'internal scratch']
  #allocation2 [shape = 'f32[8,64]{1,0:T(8,128)}', space=vmem, size = 0x1000, scoped, tag = 'scratch operand']
  %s0 = inlined_call_operand.vmem [shape: f32[16,64], index: 0, kind: input, shape index: {}]
  %s1 = inlined_call_operand.vmem [shape: bf16[64,256], index: 1, kind: input, shape index: {}]
  %s2 = inlined_call_operand.vmem [shape: f32[1,256], index: 2, kind: input, shape index: {}]
  %s3 = inlined_call_operand.vmem [shape: bf16[256,64], index: 3, kind: input, shape index: {}]
  %s4 = inlined_call_operand.vmem [shape: f32[1,64], index: 4, kind: input, shape index: {}]
  %s5 = inlined_call_operand.hbm [shape: f32[16,64], index: 5, kind: output, shape index: {}]
  %s6 = sld [smem:[#allocation0]]
  $region61: #{gpt2_mlp.1} parent=0
    _
  %s8 = ssub.s32 1, %s6
  %s9 = scalar_select 0, %s8, %s6
  $region1: #{gpt2_mlp.1} parent=0
    #allocation3 [shape = 'u8[8192]{0}', space=vmem, size = 0x2000, scoped, tag = 'output window, operand 0']
    #allocation4 [shape = 's32[2]{0}', space=sflag, size = 0x8, scoped, tag = 'scoped memory for gpt2_mlp.1']
    %10 = vsyncpa [#allocation4], 0
    %s11 = scalar_lea.sflag [#allocation4], 1
    %12 = vsyncpa %s11, 0
    loop: start=0, step=1, limit=4
    $region2: #{gpt2_mlp.1} parent=1 // loop_pre_header
      _
    $region3: #{gpt2_mlp.1} parent=1 // loop_header
      %s14 = sphi 0, %s18
      %p15 = scmp.ge.s32.totalorder %s14, 4
      %s21 = sphi 0, %s33
      %s22 = sphi 0, %s29
      %s23 = sphi 0, %s21
      %s24 = sphi 0, %s22
      %s25 = sphi 0, %s23
      %s26 = sphi 0, %s24
      %s36 = sphi 0, %s38
      %s39 = sphi 0, %s36
      %s40 = sphi 0, %s39
      %s56 = sphi 0, %s40
      %s62 = sphi 0, %s64
      %s65 = sphi 0, %s62
      %s66 = sphi 0, %s65
      %s82 = sphi 0, %s66
      %s88 = sphi 0, %s90
      %s91 = sphi 0, %s88
      %s92 = sphi 0, %s91
      %s108 = sphi 0, %s92
      %s114 = sphi 0, %s116
      %s117 = sphi 0, %s114
      %s118 = sphi 0, %s117
      %s134 = sphi 0, %s118
      %s138 = sphi 0, %s138
      %s140 = sphi 0, %s138
      %s141 = sphi 0, %s140
      %s155 = sphi 0, %s141
      %s161 = sphi 0, %s163
      %s164 = sphi 0, %s161
      %s165 = sphi 0, %s164
      %s181 = sphi 0, %s165
    $region4: #{gpt2_mlp.1} parent=1 // loop_header_branch
      %17 = sbr.rel (%p15) target = $region8
    $region5: #{gpt2_mlp.1} parent=1 // loop_body
      %s19 = ssub.s32 %s14, 1
      %s20 = ssub.s32 %s14, 2
      %s27 = sadd.s32 1, %s22
      %p28 = scmp.ge.s32.totalorder %s27, 1
      %s29 = scalar_select %p28, 0, %s27
      %s30 = sadd.s32 1, %s21
      %s31 = scalar_select %p28, %s30, %s21
      %p32 = scmp.ge.s32.totalorder %s31, 2
      %s33 = scalar_select %p32, 0, %s31
      %s34 = ssub.s32 %s21, %s33
      %p35 = scmp.eq.s32.totalorder %s34, 0
      %s37 = sadd.s32 %s36, 1
      %s38 = scalar_select %p35, %s36, %s37
      %p41 = pneg %p35
      %p42 = scmp.eq.s32.totalorder %s14, 1
      %p43 = por %p41, %p42
      %p44 = scmp.ne.s32.totalorder %s36, %s39
      %p45 = scmp.eq.s32.totalorder %s14, 0
      %p46 = por %p44, %p45
      %p47 = scmp.ne.s32.totalorder %s36, %s39
      %p48 = scmp.eq.s32.totalorder %s19, 1
      %p49 = por %p47, %p48
      %p50 = scmp.ne.s32.totalorder %s39, %s40
      %p51 = scmp.eq.s32.totalorder %s19, 0
      %p52 = por %p50, %p51
      %p53 = scmp.ne.s32.totalorder %s39, %s40
      %p54 = scmp.eq.s32.totalorder %s20, 1
      %p55 = por %p53, %p54
      %p57 = scmp.ne.s32.totalorder %s40, %s56
      %p58 = scmp.eq.s32.totalorder %s20, 0
      %p59 = por %p57, %p58
      %s60 = ssub.s32 %s22, %s29
      %p61 = scmp.eq.s32.totalorder %s60, 0
      %s63 = sadd.s32 %s62, 1
      %s64 = scalar_select %p61, %s62, %s63
      %p67 = pneg %p61
      %p68 = scmp.eq.s32.totalorder %s14, 1
      %p69 = por %p67, %p68
      %p70 = scmp.ne.s32.totalorder %s62, %s65
      %p71 = scmp.eq.s32.totalorder %s14, 0
      %p72 = por %p70, %p71
      %p73 = scmp.ne.s32.totalorder %s62, %s65
      %p74 = scmp.eq.s32.totalorder %s19, 1
      %p75 = por %p73, %p74
      %p76 = scmp.ne.s32.totalorder %s65, %s66
      %p77 = scmp.eq.s32.totalorder %s19, 0
      %p78 = por %p76, %p77
      %p79 = scmp.ne.s32.totalorder %s65, %s66
      %p80 = scmp.eq.s32.totalorder %s20, 1
      %p81 = por %p79, %p80
      %p83 = scmp.ne.s32.totalorder %s66, %s82
      %p84 = scmp.eq.s32.totalorder %s20, 0
      %p85 = por %p83, %p84
      %s86 = ssub.s32 %s22, %s29
      %p87 = scmp.eq.s32.totalorder %s86, 0
      %s89 = sadd.s32 %s88, 1
      %s90 = scalar_select %p87, %s88, %s89
      %p93 = pneg %p87
      %p94 = scmp.eq.s32.totalorder %s14, 1
      %p95 = por %p93, %p94
      %p96 = scmp.ne.s32.totalorder %s88, %s91
      %p97 = scmp.eq.s32.totalorder %s14, 0
      %p98 = por %p96, %p97
      %p99 = scmp.ne.s32.totalorder %s88, %s91
      %p100 = scmp.eq.s32.totalorder %s19, 1
      %p101 = por %p99, %p100
      %p102 = scmp.ne.s32.totalorder %s91, %s92
      %p103 = scmp.eq.s32.totalorder %s19, 0
      %p104 = por %p102, %p103
      %p105 = scmp.ne.s32.totalorder %s91, %s92
      %p106 = scmp.eq.s32.totalorder %s20, 1
      %p107 = por %p105, %p106
      %p109 = scmp.ne.s32.totalorder %s92, %s108
      %p110 = scmp.eq.s32.totalorder %s20, 0
      %p111 = por %p109, %p110
      %s112 = ssub.s32 %s22, %s29
      %p113 = scmp.eq.s32.totalorder %s112, 0
      %s115 = sadd.s32 %s114, 1
      %s116 = scalar_select %p113, %s114, %s115
      %p119 = pneg %p113
      %p120 = scmp.eq.s32.totalorder %s14, 1
      %p121 = por %p119, %p120
      %p122 = scmp.ne.s32.totalorder %s114, %s117
      %p123 = scmp.eq.s32.totalorder %s14, 0
      %p124 = por %p122, %p123
      %p125 = scmp.ne.s32.totalorder %s114, %s117
      %p126 = scmp.eq.s32.totalorder %s19, 1
      %p127 = por %p125, %p126
      %p128 = scmp.ne.s32.totalorder %s117, %s118
      %p129 = scmp.eq.s32.totalorder %s19, 0
      %p130 = por %p128, %p129
      %p131 = scmp.ne.s32.totalorder %s117, %s118
      %p132 = scmp.eq.s32.totalorder %s20, 1
      %p133 = por %p131, %p132
      %p135 = scmp.ne.s32.totalorder %s118, %s134
      %p136 = scmp.eq.s32.totalorder %s20, 0
      %p137 = por %p135, %p136
      %s139 = sadd.s32 %s138, 1
      %p142 = scmp.eq.s32.totalorder %s14, 1
      %p143 = scmp.ne.s32.totalorder %s138, %s140
      %p144 = scmp.eq.s32.totalorder %s14, 0
      %p145 = por %p143, %p144
      %p146 = scmp.ne.s32.totalorder %s138, %s140
      %p147 = scmp.eq.s32.totalorder %s19, 1
      %p148 = por %p146, %p147
      %p149 = scmp.ne.s32.totalorder %s140, %s141
      %p150 = scmp.eq.s32.totalorder %s19, 0
      %p151 = por %p149, %p150
      %p152 = scmp.ne.s32.totalorder %s140, %s141
      %p153 = scmp.eq.s32.totalorder %s20, 1
      %p154 = por %p152, %p153
      %p156 = scmp.ne.s32.totalorder %s141, %s155
      %p157 = scmp.eq.s32.totalorder %s20, 0
      %p158 = por %p156, %p157
      %s159 = ssub.s32 %s21, %s33
      %p160 = scmp.eq.s32.totalorder %s159, 0
      %s162 = sadd.s32 %s161, 1
      %s163 = scalar_select %p160, %s161, %s162
      %p166 = pneg %p160
      %p167 = scmp.eq.s32.totalorder %s14, 1
      %p168 = por %p166, %p167
      %p169 = scmp.ne.s32.totalorder %s161, %s164
      %p170 = scmp.eq.s32.totalorder %s14, 0
      %p171 = por %p169, %p170
      %p172 = scmp.ne.s32.totalorder %s161, %s164
      %p173 = scmp.eq.s32.totalorder %s19, 1
      %p174 = por %p172, %p173
      %p175 = scmp.ne.s32.totalorder %s164, %s165
      %p176 = scmp.eq.s32.totalorder %s19, 0
      %p177 = por %p175, %p176
      %p178 = scmp.ne.s32.totalorder %s164, %s165
      %p179 = scmp.eq.s32.totalorder %s20, 1
      %p180 = por %p178, %p179
      %p182 = scmp.ne.s32.totalorder %s165, %s181
      %p183 = scmp.eq.s32.totalorder %s20, 0
      %p184 = por %p182, %p183
      %p185 = scmp.le.s32.totalorder 1, %s14
      %p186 = scmp.lt.s32.totalorder %s14, 3
      %p187 = pnand %p185, %p186
      %p188 = pneg %p187
      // Predicated region
      $region9: #{gpt2_mlp.1} parent=5 // pred_check
        _
      $region10: #{gpt2_mlp.1} parent=5 // pred_check_branch
        %190 = sbr.rel (%p187) target = $region12
      $region11: #{gpt2_mlp.1} parent=5 // pred_region
        %s191 = ssub.s32 %s14, 1
        // Predicated region
        $region13: #{gpt2_mlp.1} parent=11 // pred_check
          %p192 = pneg %p78
        $region14: #{gpt2_mlp.1} parent=11 // pred_check_branch
          %194 = sbr.rel (%p192) target = $region16
        $region15: #{gpt2_mlp.1} parent=11 // pred_region
          %s195 = smul.u32 2, %s24
          %p196 = scmp.lt.s32.totalorder %s195, 1
          %s197 = scalar_select %p196, %s195, 1
          %s198 = smul.addr %s197, 4
          %s199 = scalar_lea.vmem %s1, %s198
          %s200 = smul.u32 2, %s24
        $region16: #{gpt2_mlp.1} parent=11 // pred_fallthru
          _
        // Predicated region
        $region17: #{gpt2_mlp.1} parent=11 // pred_check
          %p201 = pneg %p104
        $region18: #{gpt2_mlp.1} parent=11 // pred_check_branch
          %203 = sbr.rel (%p201) target = $region20
        $region19: #{gpt2_mlp.1} parent=11 // pred_region
          %s204 = smul.u32 2, %s24
          %p205 = scmp.lt.s32.totalorder %s204, 1
          %s206 = scalar_select %p205, %s204, 1
          %s207 = scalar_lea.vmem %s2, %s206
          %s208 = smul.u32 2, %s24
        $region20: #{gpt2_mlp.1} parent=11 // pred_fallthru
          _
        // Predicated region
        $region21: #{gpt2_mlp.1} parent=11 // pred_check
          %p209 = pneg %p130
        $region22: #{gpt2_mlp.1} parent=11 // pred_check_branch
          %211 = sbr.rel (%p209) target = $region24
        $region23: #{gpt2_mlp.1} parent=11 // pred_region
          %s212 = smul.u32 32, %s24
          %p213 = scmp.lt.s32.totalorder %s212, 31
          %s214 = scalar_select %p213, %s212, 31
          %s215 = smul.addr %s214, 4
          %s216 = scalar_lea.vmem %s3, %s215
          %s217 = smul.u32 32, %s24
        $region24: #{gpt2_mlp.1} parent=11 // pred_fallthru
          _
        // Predicated region
        $region25: #{gpt2_mlp.1} parent=11 // pred_check
          %p218 = pneg %p151
        $region26: #{gpt2_mlp.1} parent=11 // pred_check_branch
          %220 = sbr.rel (%p218) target = $region28
        $region27: #{gpt2_mlp.1} parent=11 // pred_region
          _
        $region28: #{gpt2_mlp.1} parent=11 // pred_fallthru
          _
      $region12: #{gpt2_mlp.1} parent=5 // pred_fallthru
        _
      %p221 = scmp.lt.s32.totalorder %s14, 2
      // Predicated region
      $region29: #{gpt2_mlp.1} parent=5 // pred_check
        %p222 = pneg %p221
      $region30: #{gpt2_mlp.1} parent=5 // pred_check_branch
        %224 = sbr.rel (%p222) target = $region32
      $region31: #{gpt2_mlp.1} parent=5 // pred_region
        // Predicated region
        $region33: #{gpt2_mlp.1} parent=31 // pred_check
          %p225 = pneg %p46
        $region34: #{gpt2_mlp.1} parent=31 // pred_check_branch
          %227 = sbr.rel (%p225) target = $region36
        $region35: #{gpt2_mlp.1} parent=31 // pred_region
          %p228 = scmp.lt.s32.totalorder %s21, 1
          %s229 = scalar_select %p228, %s21, 1
          %s230 = smul.addr %s229, 8
          %s231 = scalar_lea.vmem %s0, %s230
        $region36: #{gpt2_mlp.1} parent=31 // pred_fallthru
          _
      $region32: #{gpt2_mlp.1} parent=5 // pred_fallthru
        _
      %p232 = scmp.le.s32.totalorder 1, %s14
      %p233 = scmp.lt.s32.totalorder %s14, 3
      %p234 = pnand %p232, %p233
      %p235 = pneg %p234
      // Predicated region
      $region37: #{gpt2_mlp.1} parent=5 // pred_check
        _
      $region38: #{gpt2_mlp.1} parent=5 // pred_check_branch
        %237 = sbr.rel (%p234) target = $region40
      $region39: #{gpt2_mlp.1} parent=5 // pred_region
        %s238 = ssub.s32 %s14, 1
        %p239 = scmp.lt.s32.totalorder %s23, 1
        %s240 = scalar_select %p239, %s23, 1
        %s241 = smul.addr %s240, 8
        %s242 = scalar_lea.vmem %s0, %s241
        %p243 = pneg %p52
        %p244 = pneg %p49
        %s245 = smul.u32 2, %s24
        %p246 = scmp.lt.s32.totalorder %s245, 1
        %s247 = scalar_select %p246, %s245, 1
        %s248 = smul.addr %s247, 4
        %s249 = scalar_lea.vmem %s1, %s248
        %p250 = pneg %p78
        %p251 = pneg %p75
        %s252 = smul.u32 2, %s24
        %p253 = scmp.lt.s32.totalorder %s252, 1
        %s254 = scalar_select %p253, %s252, 1
        %s255 = scalar_lea.vmem %s2, %s254
        %p256 = pneg %p104
        %p257 = pneg %p101
        %s258 = smul.u32 32, %s24
        %p259 = scmp.lt.s32.totalorder %s258, 31
        %s260 = scalar_select %p259, %s258, 31
        %s261 = smul.addr %s260, 4
        %s262 = scalar_lea.vmem %s3, %s261
        %p263 = pneg %p130
        %p264 = pneg %p127
        %p265 = pneg %p151
        %p266 = pneg %p148
        %p267 = pneg %p177
        %p268 = pneg %p174
        %s269 = sand.u32 %s164, 1
        %s270 = scalar_lea.sflag [#allocation4], %s269
        %s271 = sand.u32 %s164, 1
        %s272 = smul.addr %s271, 8
        %s273 = scalar_lea.vmem [#allocation3], %s272
        %p274 = scmp.lt.s32.totalorder %s23, 1
        %s275 = scalar_select %p274, %s23, 1
        %s276 = smul.addr %s275, 8
        %s277 = scalar_lea.vmem %s0, %s276
        %s278 = smul.u32 2, %s24
        %p279 = scmp.lt.s32.totalorder %s278, 1
        %s280 = scalar_select %p279, %s278, 1
        %s281 = smul.addr %s280, 4
        %s282 = scalar_lea.vmem %s1, %s281
        %s283 = smul.u32 2, %s24
        %s284 = smul.u32 2, %s24
        %p285 = scmp.lt.s32.totalorder %s284, 1
        %s286 = scalar_select %p285, %s284, 1
        %s287 = scalar_lea.vmem %s2, %s286
        %s288 = smul.u32 2, %s24
        %s289 = smul.u32 32, %s24
        %p290 = scmp.lt.s32.totalorder %s289, 31
        %s291 = scalar_select %p290, %s289, 31
        %s292 = smul.addr %s291, 4
        %s293 = scalar_lea.vmem %s3, %s292
        %s294 = smul.u32 32, %s24
        %p296 = scmp.eq.s32.totalorder %s24, 0
        // Predicated region
        $region41: #{gpt2_mlp.1} parent=39 // pred_check
          %p297 = pneg %p296
        $region42: #{gpt2_mlp.1} parent=39 // pred_check_branch
          %299 = sbr.rel (%p297) target = $region44
        $region43: #{gpt2_mlp.1} parent=39 // pred_region
          %vm300 = vcmask 523264
          %301 = vst.msk [vmem:[#allocation2] sm:$0xff] %vm300, 0.0
        $region44: #{gpt2_mlp.1} parent=39 // pred_fallthru
          _
        %v302 = vld [vmem:[%s277] sm:$0xff]
        %v303 = vpack.c.bf16 %v302, %v302
        %v304 = vld [vmem:[%s282] sm:$0xff]
        %v305 = vld [vmem:[%s282 + $0x8] sm:$0xff]
        %v306 = vld [vmem:[%s282 + $0x10] sm:$0xff]
        %v307 = vld [vmem:[%s282 + $0x18] sm:$0xff]
        %v308 = vld [vmem:[%s282 + $0x20] sm:$0xff]
        %v309 = vld [vmem:[%s282 + $0x28] sm:$0xff]
        %v310 = vld [vmem:[%s282 + $0x30] sm:$0xff]
        %v311 = vld [vmem:[%s282 + $0x38] sm:$0xff]
        %v312 = vld [vmem:[%s287] sm:$0x3]
        %v314 = vlaneseq
        %v315 = vshrl.u32 %v314, 7
        %v316 = vsub.s32 0, %v315
        %v317 = vrot.slane %v312, %v316
        %v318 = vlaneseq
        %v319 = vshrl.u32 %v318, 7
        %v320 = vsub.s32 1, %v319
        %v321 = vrot.slane %v312, %v320
        %v332 = vunpack.c.l.b16 %v304
        %v333 = vunpack.c.h.b16 %v304
        %v334 = vunpack.c.l.b16 %v305
        %v335 = vunpack.c.h.b16 %v305
        %v336 = vunpack.c.l.b16 %v306
        %v337 = vunpack.c.h.b16 %v306
        %v338 = vunpack.c.l.b16 %v307
        %v339 = vunpack.c.h.b16 %v307
        %v340 = vunpack.c.l.b16 %v308
        %v341 = vunpack.c.h.b16 %v308
        %v342 = vunpack.c.l.b16 %v309
        %v343 = vunpack.c.h.b16 %v309
        %v344 = vunpack.c.l.b16 %v310
        %v345 = vunpack.c.h.b16 %v310
        %v346 = vunpack.c.l.b16 %v311
        %v347 = vunpack.c.h.b16 %v311
        %v348 = vpack.c.b16 %v334, %v332
        %v349 = vpack.c.b16 %v335, %v333
        %v350 = vpack.c.b16 %v338, %v336
        %v351 = vpack.c.b16 %v339, %v337
        %v352 = vpack.c.b16 %v342, %v340
        %v353 = vpack.c.b16 %v343, %v341
        %v354 = vpack.c.b16 %v346, %v344
        %v355 = vpack.c.b16 %v347, %v345
        %vm364 = vcmask 523264
        %v366 = vsel %vm364, %v303, 0
        %368 = vmatprep.subr.bf16.mxu0 %v349
        %369 = vmatpush1.bf16.msra.mxu0 %v348
        %370 = vmatprep.subr.bf16.mxu0 %v351
        %371 = vmatpush1.bf16.msra.mxu0 %v350
        %372 = vmatprep.subr.bf16.mxu0 %v353
        %373 = vmatpush1.bf16.msra.mxu0 %v352
        %374 = vmatprep.subr.bf16.mxu0 %v355
        %375 = vmatpush1.bf16.msra.mxu0 %v354
        %376 = vmatprep.subr.bf16.mxu0 0
        %377 = vmatpush1.bf16.msra.mxu0 0
        %378 = vmatprep.subr.bf16.mxu0 0
        %379 = vmatpush1.bf16.msra.mxu0 0
        %380 = vmatprep.subr.bf16.mxu0 0
        %381 = vmatpush1.bf16.msra.mxu0 0
        %382 = vmatprep.subr.bf16.mxu0 0
        %383 = vmatpush1.bf16.msra.mxu0 0
        %384 = vmatprep.subr.bf16.mxu0 0
        %385 = vmatpush1.bf16.msra.mxu0 0
        %386 = vmatprep.subr.bf16.mxu0 0
        %387 = vmatpush1.bf16.msra.mxu0 0
        %388 = vmatprep.subr.bf16.mxu0 0
        %389 = vmatpush1.bf16.msra.mxu0 0
        %390 = vmatprep.subr.bf16.mxu0 0
        %391 = vmatpush1.bf16.msra.mxu0 0
        %392 = vmatprep.subr.bf16.mxu0 0
        %393 = vmatpush1.bf16.msra.mxu0 0
        %394 = vmatprep.subr.bf16.mxu0 0
        %395 = vmatpush1.bf16.msra.mxu0 0
        %396 = vmatprep.subr.bf16.mxu0 0
        %397 = vmatpush1.bf16.msra.mxu0 0
        %398 = vmatprep.subr.bf16.mxu0 0
        %399 = vmatpush1.bf16.msra.mxu0 0
        %400 = vmatprep.mubr.bf16.mxu0 0
        %401 = vmatmul.mubr.bf16.gmra.mrb[0].mxu0 %v366
        %v402 = vpop.f32.mrb[0].mxu0
        %v403 = vadd.f32 %v317, %v402
        %v404 = vpop.f32.mrb[0].mxu0
        %v405 = vadd.f32 %v321, %v404
        %v406 = vpop.f32.mrb[0].mxu0
        %v407 = vpop.f32.mrb[0].mxu0
        %408 = vdwg.mxu0
        %v409 = vmul.f32 %v403, %v403
        %v410 = vmul.f32 %v405, %v405
        %v411 = vmul.f32 %v409, 0.035677407
        %v412 = vmul.f32 %v410, 0.035677407
        %v413 = vadd.f32 %v411, 0.7978846
        %v414 = vadd.f32 %v412, 0.7978846
        %v415 = vmul.f32 %v403, %v413
        %v416 = vmul.f32 %v405, %v414
        %v417 = vtanh.pop %v415
        %v418 = vtanh.pop %v416
        %v419 = vmul.f32 %v403, 0.5
        %v420 = vmul.f32 %v405, 0.5
        %v421 = vmul.f32 %v419, %v417
        %v422 = vmul.f32 %v420, %v418
        %v423 = vadd.f32 %v419, %v421
        %v424 = vadd.f32 %v420, %v422
        %v425 = vld [vmem:[#allocation2] sm:$0xff]
        %v426 = vpack.c.bf16 %v423, %v423
        %v427 = vpack.c.bf16 %v424, %v424
        %v428 = vld [vmem:[%s293] sm:$0xf]
        %v429 = vld [vmem:[%s293 + $0x4] sm:$0xf]
        %v430 = vld [vmem:[%s293 + $0x8] sm:$0xf]
        %v431 = vld [vmem:[%s293 + $0xc] sm:$0xf]
        %v432 = vld [vmem:[%s293 + $0x10] sm:$0xf]
        %v433 = vld [vmem:[%s293 + $0x14] sm:$0xf]
        %v434 = vld [vmem:[%s293 + $0x18] sm:$0xf]
        %v435 = vld [vmem:[%s293 + $0x1c] sm:$0xf]
        %v436 = vld [vmem:[%s293 + $0x20] sm:$0xf]
        %v437 = vld [vmem:[%s293 + $0x24] sm:$0xf]
        %v438 = vld [vmem:[%s293 + $0x28] sm:$0xf]
        %v439 = vld [vmem:[%s293 + $0x2c] sm:$0xf]
        %v440 = vld [vmem:[%s293 + $0x30] sm:$0xf]
        %v441 = vld [vmem:[%s293 + $0x34] sm:$0xf]
        %v442 = vld [vmem:[%s293 + $0x38] sm:$0xf]
        %v443 = vld [vmem:[%s293 + $0x3c] sm:$0xf]
        %v444 = vld [vmem:[%s293 + $0x40] sm:$0xf]
        %v445 = vld [vmem:[%s293 + $0x44] sm:$0xf]
        %v446 = vld [vmem:[%s293 + $0x48] sm:$0xf]
        %v447 = vld [vmem:[%s293 + $0x4c] sm:$0xf]
        %v448 = vld [vmem:[%s293 + $0x50] sm:$0xf]
        %v449 = vld [vmem:[%s293 + $0x54] sm:$0xf]
        %v450 = vld [vmem:[%s293 + $0x58] sm:$0xf]
        %v451 = vld [vmem:[%s293 + $0x5c] sm:$0xf]
        %v452 = vld [vmem:[%s293 + $0x60] sm:$0xf]
        %v453 = vld [vmem:[%s293 + $0x64] sm:$0xf]
        %v454 = vld [vmem:[%s293 + $0x68] sm:$0xf]
        %v455 = vld [vmem:[%s293 + $0x6c] sm:$0xf]
        %v456 = vld [vmem:[%s293 + $0x70] sm:$0xf]
        %v457 = vld [vmem:[%s293 + $0x74] sm:$0xf]
        %v458 = vld [vmem:[%s293 + $0x78] sm:$0xf]
        %v459 = vld [vmem:[%s293 + $0x7c] sm:$0xf]
        %v492 = vunpack.c.l.b16 %v428
        %v493 = vunpack.c.l.b16 %v429
        %v494 = vunpack.c.l.b16 %v430
        %v495 = vunpack.c.l.b16 %v431
        %v496 = vunpack.c.l.b16 %v432
        %v497 = vunpack.c.l.b16 %v433
        %v498 = vunpack.c.l.b16 %v434
        %v499 = vunpack.c.l.b16 %v435
        %v500 = vunpack.c.l.b16 %v436
        %v501 = vunpack.c.l.b16 %v437
        %v502 = vunpack.c.l.b16 %v438
        %v503 = vunpack.c.l.b16 %v439
        %v504 = vunpack.c.l.b16 %v440
        %v505 = vunpack.c.l.b16 %v441
        %v506 = vunpack.c.l.b16 %v442
        %v507 = vunpack.c.l.b16 %v443
        %v508 = vunpack.c.l.b16 %v444
        %v509 = vunpack.c.l.b16 %v445
        %v510 = vunpack.c.l.b16 %v446
        %v511 = vunpack.c.l.b16 %v447
        %v512 = vunpack.c.l.b16 %v448
        %v513 = vunpack.c.l.b16 %v449
        %v514 = vunpack.c.l.b16 %v450
        %v515 = vunpack.c.l.b16 %v451
        %v516 = vunpack.c.l.b16 %v452
        %v517 = vunpack.c.l.b16 %v453
        %v518 = vunpack.c.l.b16 %v454
        %v519 = vunpack.c.l.b16 %v455
        %v520 = vunpack.c.l.b16 %v456
        %v521 = vunpack.c.l.b16 %v457
        %v522 = vunpack.c.l.b16 %v458
        %v523 = vunpack.c.l.b16 %v459
        %v524 = vpack.c.b16 %v493, %v492
        %v525 = vpack.c.b16 %v495, %v494
        %v526 = vpack.c.b16 %v497, %v496
        %v527 = vpack.c.b16 %v499, %v498
        %v528 = vpack.c.b16 %v501, %v500
        %v529 = vpack.c.b16 %v503, %v502
        %v530 = vpack.c.b16 %v505, %v504
        %v531 = vpack.c.b16 %v507, %v506
        %v532 = vpack.c.b16 %v509, %v508
        %v533 = vpack.c.b16 %v511, %v510
        %v534 = vpack.c.b16 %v513, %v512
        %v535 = vpack.c.b16 %v515, %v514
        %v536 = vpack.c.b16 %v517, %v516
        %v537 = vpack.c.b16 %v519, %v518
        %v538 = vpack.c.b16 %v521, %v520
        %v539 = vpack.c.b16 %v523, %v522
        %556 = vmatprep.subr.bf16.mxu0 0
        %557 = vmatpush1.bf16.msra.mxu0 %v524
        %558 = vmatprep.subr.bf16.mxu0 0
        %559 = vmatpush1.bf16.msra.mxu0 %v525
        %560 = vmatprep.subr.bf16.mxu0 0
        %561 = vmatpush1.bf16.msra.mxu0 %v526
        %562 = vmatprep.subr.bf16.mxu0 0
        %563 = vmatpush1.bf16.msra.mxu0 %v527
        %564 = vmatprep.subr.bf16.mxu0 0
        %565 = vmatpush1.bf16.msra.mxu0 %v528
        %566 = vmatprep.subr.bf16.mxu0 0
        %567 = vmatpush1.bf16.msra.mxu0 %v529
        %568 = vmatprep.subr.bf16.mxu0 0
        %569 = vmatpush1.bf16.msra.mxu0 %v530
        %570 = vmatprep.subr.bf16.mxu0 0
        %571 = vmatpush1.bf16.msra.mxu0 %v531
        %572 = vmatprep.subr.bf16.mxu0 0
        %573 = vmatpush1.bf16.msra.mxu0 %v532
        %574 = vmatprep.subr.bf16.mxu0 0
        %575 = vmatpush1.bf16.msra.mxu0 %v533
        %576 = vmatprep.subr.bf16.mxu0 0
        %577 = vmatpush1.bf16.msra.mxu0 %v534
        %578 = vmatprep.subr.bf16.mxu0 0
        %579 = vmatpush1.bf16.msra.mxu0 %v535
        %580 = vmatprep.subr.bf16.mxu0 0
        %581 = vmatpush1.bf16.msra.mxu0 %v536
        %582 = vmatprep.subr.bf16.mxu0 0
        %583 = vmatpush1.bf16.msra.mxu0 %v537
        %584 = vmatprep.subr.bf16.mxu0 0
        %585 = vmatpush1.bf16.msra.mxu0 %v538
        %586 = vmatprep.subr.bf16.mxu0 0
        %587 = vmatpush1.bf16.msra.mxu0 %v539
        %588 = vmatprep.mubr.bf16.mxu0 %v427
        %589 = vmatmul.mubr.bf16.gmra.mrb[0].mxu0 %v426
        %v590 = vpop.f32.mrb[0].mxu0
        %v591 = vadd.f32 0.0, %v590
        %v592 = vpop.f32.mrb[0].mxu0
        %v593 = vpop.f32.mrb[0].mxu0
        %v594 = vpop.f32.mrb[0].mxu0
        %595 = vdwg.mxu0
        %v596 = vadd.f32 %v425, %v591
        %597 = vst.msk [vmem:[#allocation2] sm:$0xff] %vm364, %v596
        // Predicated region
        $region45: #{gpt2_mlp.1} parent=39 // pred_check
          %p598 = pneg %p296
        $region46: #{gpt2_mlp.1} parent=39 // pred_check_branch
          %600 = sbr.rel (%p598) target = $region48
        $region47: #{gpt2_mlp.1} parent=39 // pred_region
          %v601 = vld [vmem:[#allocation2] sm:$0xff]
          %v602 = vld [vmem:[%s4] sm:$0x1]
          %v604 = vlaneseq
          %v605 = vshrl.u32 %v604, 7
          %v606 = vsub.s32 0, %v605
          %v607 = vrot.slane %v602, %v606
          %v609 = vadd.f32 %v601, %v607
          %610 = vst.msk [vmem:[%s273] sm:$0xff] %vm364, %v609
        $region48: #{gpt2_mlp.1} parent=39 // pred_fallthru
          _
        %s611 = sand.u32 %s164, 1
        %s612 = scalar_lea.sflag [#allocation4], %s611
        %s613 = sand.u32 %s164, 1
        %s614 = smul.addr %s613, 8
        %s615 = scalar_lea.vmem [#allocation3], %s614
        // Predicated region
        $region49: #{gpt2_mlp.1} parent=39 // pred_check
          %p616 = pneg %p174
        $region50: #{gpt2_mlp.1} parent=39 // pred_check_branch
          %618 = sbr.rel (%p616) target = $region52
        $region51: #{gpt2_mlp.1} parent=39 // pred_region
          %s620 = ssub.s32 128, 128
          %621 = vsyncadd %s612, %s620
          %s622 = smul.addr %s23, 128
          %s623 = scalar_lea.hbm %s5, %s622
          %s625 = sshll.u32 %s615, 4
          %s626 = int_to_ptr.vmem [resolvable:$true] %s625
          %628 = dma.vmem_to_hbm [thread:$0]  %s626, 128, %s623, %s612
        $region52: #{gpt2_mlp.1} parent=39 // pred_fallthru
          _
      $region40: #{gpt2_mlp.1} parent=5 // pred_fallthru
        _
      %p629 = scmp.le.s32.totalorder 2, %s14
      // Predicated region
      $region53: #{gpt2_mlp.1} parent=5 // pred_check
        %p630 = pneg %p629
      $region54: #{gpt2_mlp.1} parent=5 // pred_check_branch
        %632 = sbr.rel (%p630) target = $region56
      $region55: #{gpt2_mlp.1} parent=5 // pred_region
        %s633 = ssub.s32 %s14, 2
        // Predicated region
        $region57: #{gpt2_mlp.1} parent=55 // pred_check
          %p634 = pneg %p180
        $region58: #{gpt2_mlp.1} parent=55 // pred_check_branch
          %636 = sbr.rel (%p634) target = $region60
        $region59: #{gpt2_mlp.1} parent=55 // pred_region
          %s637 = sand.u32 %s165, 1
          %s638 = scalar_lea.sflag [#allocation4], %s637
          %s639 = sand.u32 %s165, 1
          %s640 = smul.addr %s639, 8
          %s641 = scalar_lea.vmem [#allocation3], %s640
          %642 = dma.done %s638, 128
        $region60: #{gpt2_mlp.1} parent=55 // pred_fallthru
          _
      $region56: #{gpt2_mlp.1} parent=5 // pred_fallthru
        _
    $region6: #{gpt2_mlp.1} parent=1 // loop_footer
      %s18 = sadd.s32 1, %s14
    $region7: #{gpt2_mlp.1} parent=1 // loop_footer_branch
      %13 = sbr.rel target = $region3
    $region8: #{gpt2_mlp.1} parent=1 // loop_exit
      _
    %643 = vsyncpa [#allocation4], 1
    %s644 = scalar_lea.sflag [#allocation4], 1
    %645 = vsyncpa %s644, 1

</llo_original>
